<compile_context>
chip_gen: v7x
topology: tpu7x:2x2x1
jax: 0.10.0
libtpu: 0.0.40
codegen_flags: <defaults>
</compile_context>

<pallas_src>
from functools import partial

import jax
import jax.numpy as jnp
from jax.experimental import pallas as pl
from jax.experimental.pallas import tpu as pltpu


# --------------------------------------------------------------------------- helpers
def _round_up(x, m):
    return ((x + m - 1) // m) * m


def _row_tile(m):
    """Row tile: 256 for big M, else a multiple of 16 covering M (bf16 sublane packing)."""
    return 256 if m >= 256 else _round_up(max(m, 16), 16)


def _pad2(x, rows, cols):
    r, c = x.shape
    if r == rows and c == cols:
        return x
    return jnp.pad(x, ((0, rows - r), (0, cols - c)))


def _im2col(x, k, stride, pad, pad_value=0.0):
    """NHWC -> (N*Ho*Wo, C*k*k) patches, channel-major / tap-minor column order."""
    N, H, W, C = x.shape
    if pad > 0:
        x = jnp.pad(x, ((0, 0), (pad, pad), (pad, pad), (0, 0)),
                    constant_values=pad_value)
    Ho = (H + 2 * pad - k) // stride + 1
    Wo = (W + 2 * pad - k) // stride + 1
    cols = [
        x[:, di: di + stride * (Ho - 1) + 1: stride,
             dj: dj + stride * (Wo - 1) + 1: stride, :]
        for di in range(k) for dj in range(k)
    ]
    patches = jnp.stack(cols, axis=-1)          # (N, Ho, Wo, C, k*k)
    return patches.reshape(N * Ho * Wo, C * k * k), Ho, Wo


# --------------------------------------------------------------------------- fused matmul kernels
def _mm_fused_kernel(a_ref, w_ref, b_ref, o_ref, *, relu):
    """Single-K-step path: dot + bias (+ ReLU) straight to output, no scratch accumulator."""
    y = jnp.dot(a_ref[...], w_ref[...], preferred_element_type=jnp.float32) + b_ref[...]
    if relu:
        y = jnp.maximum(y, 0.0)
    o_ref[...] = y.astype(o_ref.dtype)


def _mm_fused_res_kernel(a_ref, w_ref, b_ref, r_ref, o_ref):
    y = (jnp.dot(a_ref[...], w_ref[...], preferred_element_type=jnp.float32)
         + b_ref[...] + r_ref[...].astype(jnp.float32))
    o_ref[...] = jnp.maximum(y, 0.0).astype(o_ref.dtype)


def _mm_acc_kernel(a_ref, w_ref, b_ref, o_ref, acc_ref, *, relu):
    """Multi-K fallback (only if K > 2048): f32 VMEM accumulator over the K grid axis."""
    @pl.when(pl.program_id(2) == 0)
    def _():
        acc_ref[...] = jnp.zeros_like(acc_ref)

    acc_ref[...] += jnp.dot(a_ref[...], w_ref[...], preferred_element_type=jnp.float32)

    @pl.when(pl.program_id(2) == pl.num_programs(2) - 1)
    def _():
        y = acc_ref[...] + b_ref[...]
        if relu:
            y = jnp.maximum(y, 0.0)
        o_ref[...] = y.astype(o_ref.dtype)


def _mm_acc_res_kernel(a_ref, w_ref, b_ref, r_ref, o_ref, acc_ref):
    @pl.when(pl.program_id(2) == 0)
    def _():
        acc_ref[...] = jnp.zeros_like(acc_ref)

    acc_ref[...] += jnp.dot(a_ref[...], w_ref[...], preferred_element_type=jnp.float32)

    @pl.when(pl.program_id(2) == pl.num_programs(2) - 1)
    def _():
        y = acc_ref[...] + b_ref[...] + r_ref[...].astype(jnp.float32)
        o_ref[...] = jnp.maximum(y, 0.0).astype(o_ref.dtype)


_MAX_SINGLE_K = 2048   # largest K in this net; single-step weight block <= 2 MB bf16


@partial(jax.jit, static_argnames=("relu",))
def matmul_bias_act(a, w, bias, *, relu, residual=None):
    """(M,K)@(K,N) + bias [+ residual] [+ ReLU].  a/w/residual bf16, bias f32 -> bf16 (M,N)."""
    M, K = a.shape
    _, N = w.shape
    tm = _row_tile(M)
    Mp = _round_up(M, tm)
    Kp = _round_up(K, 128)
    Np = _round_up(N, 128)

    # Lane-dense N tiles; prefer >= 2 (i,j) tiles so v7x's second TensorCore gets work.
    tn = min(Np, 512)
    if Np % tn:
        tn = 128
    if (Mp // tm) * (Np // tn) < 2 and Np >= 256:
        tn = Np // 2

    a_p = _pad2(a, Mp, Kp)
    w_p = _pad2(w, Kp, Np)
    b_p = _pad2(bias.reshape(1, N).astype(jnp.float32), 1, Np)
    out_shape = jax.ShapeDtypeStruct((Mp, Np), jnp.bfloat16)

    if Kp <= _MAX_SINGLE_K:
        grid = (Mp // tm, Np // tn)
        in_specs = [pl.BlockSpec((tm, Kp), lambda i, j: (i, 0)),
                    pl.BlockSpec((Kp, tn), lambda i, j: (0, j)),
                    pl.BlockSpec((1, tn), lambda i, j: (0, j))]
        out_spec = pl.BlockSpec((tm, tn), lambda i, j: (i, j))
        cparams = pltpu.CompilerParams(dimension_semantics=("parallel", "parallel"))
        if residual is None:
            out = pl.pallas_call(
                partial(_mm_fused_kernel, relu=relu),
                out_shape=out_shape,
                grid_spec=pltpu.PrefetchScalarGridSpec(
                    num_scalar_prefetch=0, grid=grid,
                    in_specs=in_specs, out_specs=out_spec),
                compiler_params=cparams,
            )(a_p, w_p, b_p)
        else:
            r_p = _pad2(residual, Mp, Np)
            in_specs = in_specs + [pl.BlockSpec((tm, tn), lambda i, j: (i, j))]
            out = pl.pallas_call(
                _mm_fused_res_kernel,
                out_shape=out_shape,
                grid_spec=pltpu.PrefetchScalarGridSpec(
                    num_scalar_prefetch=0, grid=grid,
                    in_specs=in_specs, out_specs=out_spec),
                compiler_params=cparams,
            )(a_p, w_p, b_p, r_p)
    else:
        tk = 512 if Kp % 512 == 0 else (256 if Kp % 256 == 0 else 128)
        grid = (Mp // tm, Np // tn, Kp // tk)
        in_specs = [pl.BlockSpec((tm, tk), lambda i, j, k: (i, k)),
                    pl.BlockSpec((tk, tn), lambda i, j, k: (k, j)),
                    pl.BlockSpec((1, tn), lambda i, j, k: (0, j))]
        out_spec = pl.BlockSpec((tm, tn), lambda i, j, k: (i, j))
        acc = pltpu.VMEM((tm, tn), jnp.float32)
        cparams = pltpu.CompilerParams(
            dimension_semantics=("parallel", "parallel", "arbitrary"))
        if residual is None:
            out = pl.pallas_call(
                partial(_mm_acc_kernel, relu=relu),
                out_shape=out_shape,
                grid_spec=pltpu.PrefetchScalarGridSpec(
                    num_scalar_prefetch=0, grid=grid,
                    in_specs=in_specs, out_specs=out_spec, scratch_shapes=[acc]),
                compiler_params=cparams,
            )(a_p, w_p, b_p)
        else:
            r_p = _pad2(residual, Mp, Np)
            in_specs = in_specs + [pl.BlockSpec((tm, tn), lambda i, j, k: (i, j))]
            out = pl.pallas_call(
                _mm_acc_res_kernel,
                out_shape=out_shape,
                grid_spec=pltpu.PrefetchScalarGridSpec(
                    num_scalar_prefetch=0, grid=grid,
                    in_specs=in_specs, out_specs=out_spec, scratch_shapes=[acc]),
                compiler_params=cparams,
            )(a_p, w_p, b_p, r_p)

    if Mp != M or Np != N:
        out = out[:M, :N]
    return out


# --------------------------------------------------------------------------- grouped 3x3 conv
def _gconv_kernel(a_ref, w_ref, b_ref, o_ref, *, n_grp, cgk, coutg):
    """One pack = n_grp groups.  The weight block is dense (cgk, 128) -- no zero blocks in HBM;
    the block-diagonal group structure is rebuilt with a per-group lane mask in VMEM, then each
    group contributes one full-lane-width MXU dot (compute is not the bottleneck here)."""
    w = w_ref[0]                                                       # (cgk, 128) bf16
    lane_grp = jax.lax.broadcasted_iota(jnp.int32, (cgk, 128), 1) // coutg
    acc = jnp.zeros((a_ref.shape[0], 128), jnp.float32)
    for r in range(n_grp):                                             # static unroll, n_grp <= 16
        w_r = jnp.where(lane_grp == r, w, 0.0)                         # keep only group r's lanes
        acc += jnp.dot(a_ref[:, r * cgk:(r + 1) * cgk], w_r,
                       preferred_element_type=jnp.float32)
    o_ref[...] = jnp.maximum(acc + b_ref[...], 0.0).astype(o_ref.dtype)


@partial(jax.jit, static_argnames=("stride",))
def conv3x3_grouped_fused(x, w_packed, bias, *, stride):
    """Grouped 3x3 conv + folded-BN bias + ReLU.

    x: (N,H,W,C) bf16; w_packed: (n_packs, Cg*9, 128) bf16 (dense; 128 lanes = P consecutive
    groups x CoutG output channels, P = 128 // CoutG); bias: (C,) f32.
    """
    N, H, W, C = x.shape
    a, Ho, Wo = _im2col(x, 3, stride, 1)            # (M, C*9): per-group K slabs contiguous
    n_packs, cgk, lanes = w_packed.shape            # lanes == 128
    cg = cgk // 9
    coutg = cg                                      # in/out group width match for this conv
    n_grp = lanes // coutg                          # groups per pack (P)
    kpack = n_grp * cgk                             # K columns per pack (1152 for all layers)
    M = N * Ho * Wo
    tm = 128 if M >= 128 else _round_up(max(M, 16), 16)   # cap tm to avoid vreg pressure
    Mp = _round_up(M, tm)
    if Mp != M:
        a = jnp.pad(a, ((0, Mp - M), (0, 0)))
    cout = n_packs * lanes
    b2 = bias.reshape(1, cout).astype(jnp.float32)

    out = pl.pallas_call(
        partial(_gconv_kernel, n_grp=n_grp, cgk=cgk, coutg=coutg),
        out_shape=jax.ShapeDtypeStruct((Mp, cout), jnp.bfloat16),
        grid_spec=pltpu.PrefetchScalarGridSpec(
            num_scalar_prefetch=0,
            grid=(n_packs, Mp // tm),
            in_specs=[
                pl.BlockSpec((tm, kpack), lambda p, i: (i, p)),
                pl.BlockSpec((1, cgk, lanes), lambda p, i: (p, 0, 0)),
                pl.BlockSpec((1, lanes), lambda p, i: (0, p)),
            ],
            out_specs=pl.BlockSpec((tm, lanes), lambda p, i: (i, p)),
        ),
        compiler_params=pltpu.CompilerParams(
            dimension_semantics=("parallel", "parallel")),
    )(a, w_packed, b2)
    if Mp != M:
        out = out[:M]
    return out.reshape(N, Ho, Wo, cout)


# --------------------------------------------------------------------------- max-pool / GAP
def _max9_kernel(x_ref, o_ref):
    o_ref[...] = jnp.max(x_ref[...], axis=0)


@jax.jit
def pallas_maxpool_3x3_s2_p1(x):
    """MaxPool2d(kernel=3, stride=2, padding=1) on NHWC; 9-tap max on a lane-dense layout."""
    N, H, W, C = x.shape
    Ho = (H + 2 - 3) // 2 + 1
    Wo = (W + 2 - 3) // 2 + 1
    xp = jnp.pad(x, ((0, 0), (1, 1), (1, 1), (0, 0)), constant_values=float("-inf"))
    taps = [xp[:, di: di + 2 * (Ho - 1) + 1: 2,
                  dj: dj + 2 * (Wo - 1) + 1: 2, :]
            for di in range(3) for dj in range(3)]
    stacked = jnp.stack(taps, axis=0).reshape(9, -1)        # (9, N*Ho*Wo*C)
    E = stacked.shape[1]
    Ep = _round_up(E, 8 * 128)
    if Ep != E:
        stacked = jnp.pad(stacked, ((0, 0), (0, Ep - E)), constant_values=float("-inf"))
    R = Ep // 128
    stacked = stacked.reshape(9, R, 128)
    tr = 256 if (R % 256 == 0 and R >= 256) else R
    out = pl.pallas_call(
        _max9_kernel,
        out_shape=jax.ShapeDtypeStruct((R, 128), x.dtype),
        grid_spec=pltpu.PrefetchScalarGridSpec(
            num_scalar_prefetch=0,
            grid=(R // tr,),
            in_specs=[pl.BlockSpec((9, tr, 128), lambda i: (0, i, 0))],
            out_specs=pl.BlockSpec((tr, 128), lambda i: (i, 0)),
        ),
        compiler_params=pltpu.CompilerParams(dimension_semantics=("parallel",)),
    )(stacked)
    return out.reshape(-1)[:E].reshape(N, Ho, Wo, C)


def _gap_kernel(x_ref, o_ref):
    o_ref[...] = jnp.mean(x_ref[...].astype(jnp.float32), axis=1)


@jax.jit
def pallas_global_avg_pool(x):
    """NHWC -> (N, C); adaptive_avg_pool2d((1,1)). Layer4 activations are tiny -> single block."""
    N, H, W, C = x.shape
    xr = x.reshape(N, H * W, C)
    return pl.pallas_call(
        _gap_kernel,
        out_shape=jax.ShapeDtypeStruct((N, C), jnp.float32),
    )(xr)


# --------------------------------------------------------------------------- network pieces
@jax.jit
def stem_conv(x, w, b):
    """7x7/s2/p3 conv with x*2-1 and BN+ReLU folded in (im2col pad value 0.5 makes fold exact)."""
    N = x.shape[0]
    a, Ho, Wo = _im2col(x, 7, 2, 3, pad_value=0.5)
    y = matmul_bias_act(a.astype(jnp.bfloat16), w, b, relu=True)
    return y.reshape(N, Ho, Wo, w.shape[1])


@partial(jax.jit, static_argnames=("stride",))
def bottleneck(x, p, *, stride):
    N, H, W, Cin = x.shape
    width = p["w1"].shape[1]
    outp = p["w3"].shape[1]
    # conv1 1x1 + BN + ReLU (fused epilogue)
    out = matmul_bias_act(x.reshape(N * H * W, Cin), p["w1"], p["b1"], relu=True)
    out = out.reshape(N, H, W, width)
    # conv2 3x3 grouped (stride) + BN + ReLU (fused, dense group packs)
    out = conv3x3_grouped_fused(out, p["w2"], p["b2"], stride=stride)
    No, Ho, Wo, _ = out.shape
    # identity / downsample (1x1 stride + BN, no ReLU, fused)
    if "ds_w" in p:
        xs = x[:, ::stride, ::stride, :] if stride > 1 else x
        ident = matmul_bias_act(xs.reshape(No * Ho * Wo, Cin), p["ds_w"], p["ds_b"], relu=False)
    else:
        ident = x.reshape(No * Ho * Wo, Cin)
    # conv3 1x1 + BN + residual add + ReLU (all in the matmul epilogue)
    y = matmul_bias_act(out.reshape(No * Ho * Wo, width), p["w3"], p["b3"],
                        relu=True, residual=ident)
    return y.reshape(No, Ho, Wo, outp)


def partial_resnext_forward(params, x_nchw):
    """Matches PartialResNeXt.forward: x*2-1 -> stem/layer1..4 -> GAP -> (N, 2048)."""
    x = jnp.transpose(x_nchw, (0, 2, 3, 1)).astype(jnp.bfloat16)   # NCHW -> NHWC, bf16
    x = stem_conv(x, params["stem_w"], params["stem_b"])
    x = pallas_maxpool_3x3_s2_p1(x)
    for li, layer in enumerate(params["layers"]):
        for bi, blk in enumerate(layer):
            stride = 2 if (li > 0 and bi == 0) else 1
            x = bottleneck(x, blk, stride=stride)
    return pallas_global_avg_pool(x)


# --------------------------------------------------------------------------- parameters
def _bn_init(key, c):
    k1, k2, k3, k4 = jax.random.split(key, 4)
    return dict(
        gamma=jax.random.uniform(k1, (c,), jnp.float32, 0.9, 1.1),
        beta=jax.random.normal(k2, (c,), jnp.float32) * 0.01,
        mean=jax.random.normal(k3, (c,), jnp.float32) * 0.01,
        var=jax.random.uniform(k4, (c,), jnp.float32, 0.8, 1.2),
    )


def _make_block_raw(nk, inplanes, planes, stride, groups=32, base_width=8):
    width = int(planes * (base_width / 64.0)) * groups
    outp = planes * 4
    cg = width // groups
    p = {}
    p["conv1_w"] = jax.random.normal(nk(), (inplanes, width), jnp.float32) * (2.0 / inplanes) ** 0.5
    p["bn1"] = _bn_init(nk(), width)
    # grouped 3x3 weight stored (groups, Cg_in, 9, Cg_out)
    p["conv2_w"] = jax.random.normal(nk(), (groups, cg, 9, cg), jnp.float32) * (2.0 / (9 * cg)) ** 0.5
    p["bn2"] = _bn_init(nk(), width)
    p["conv3_w"] = jax.random.normal(nk(), (width, outp), jnp.float32) * (2.0 / width) ** 0.5
    p["bn3"] = _bn_init(nk(), outp)
    if stride != 1 or inplanes != outp:
        p["ds_w"] = jax.random.normal(nk(), (inplanes, outp), jnp.float32) * (2.0 / inplanes) ** 0.5
        p["ds_bn"] = _bn_init(nk(), outp)
    return p


def init_raw_params(key):
    keys = iter(jax.random.split(key, 1024))
    nk = lambda: next(keys)
    raw = {}
    raw["conv1_w"] = jax.random.normal(nk(), (49 * 1, 64), jnp.float32) * (2.0 / 49.0) ** 0.5
    raw["bn1"] = _bn_init(nk(), 64)
    layers = []
    inplanes = 64
    for planes, blocks, stride in [(64, 3, 1), (128, 4, 2), (256, 23, 2), (512, 3, 2)]:
        blks = []
        for b in range(blocks):
            s = stride if b == 0 else 1
            blks.append(_make_block_raw(nk, inplanes, planes, s))
            inplanes = planes * 4
        layers.append(blks)
    raw["layers"] = layers
    return raw


def _bn_fold(bn, eps=1e-5):
    scale = bn["gamma"] / jnp.sqrt(bn["var"] + eps)
    bias = bn["beta"] - bn["mean"] * scale
    return scale, bias


def _pack_grouped(w_g, scale):
    """(groups, Cg, 9, CoutG) grouped weight -> dense (n_packs, Cg*9, 128): 128 lanes hold P
    consecutive groups' CoutG output channels each (no zero padding in HBM)."""
    groups, cg, taps, coutg = w_g.shape
    P = 128 // coutg
    n_packs = groups // P
    w = w_g * scale.reshape(groups, 1, 1, coutg)                 # fold BN scale per out channel
    w = w.reshape(n_packs, P, cg * taps, coutg)
    w = jnp.transpose(w, (0, 2, 1, 3)).reshape(n_packs, cg * taps, P * coutg)
    return w.astype(jnp.bfloat16)


def prepare_params(raw):
    """Fold eval-mode BN into weights/biases, fold x*2-1 into the stem, pack grouped weights."""
    prep = {}
    s, b = _bn_fold(raw["bn1"])
    w = raw["conv1_w"]
    prep["stem_w"] = (2.0 * w * s[None, :]).astype(jnp.bfloat16)
    prep["stem_b"] = (b - s * jnp.sum(w, axis=0)).astype(jnp.float32)
    layers = []
    for lraw in raw["layers"]:
        blks = []
        for p in lraw:
            q = {}
            s1, b1 = _bn_fold(p["bn1"])
            q["w1"] = (p["conv1_w"] * s1[None, :]).astype(jnp.bfloat16)
            q["b1"] = b1.astype(jnp.float32)
            s2, b2 = _bn_fold(p["bn2"])
            q["w2"] = _pack_grouped(p["conv2_w"], s2)
            q["b2"] = b2.astype(jnp.float32)
            s3, b3 = _bn_fold(p["bn3"])
            q["w3"] = (p["conv3_w"] * s3[None, :]).astype(jnp.bfloat16)
            q["b3"] = b3.astype(jnp.float32)
            if "ds_w" in p:
                sd, bd = _bn_fold(p["ds_bn"])
                q["ds_w"] = (p["ds_w"] * sd[None, :]).astype(jnp.bfloat16)
                q["ds_b"] = bd.astype(jnp.float32)
            blks.append(q)
        layers.append(blks)
    prep["layers"] = layers
    return prep


if __name__ == "__main__":
    key = jax.random.PRNGKey(0)
    k_params, k_x = jax.random.split(key)
    raw = init_raw_params(k_params)
    params = prepare_params(raw)
    # input: NCHW, 1 channel (conv1 was rebuilt for single-channel input in the reference)
    x = jax.random.uniform(k_x, (2, 1, 32, 32), jnp.float32)
    feats = partial_resnext_forward(params, x)
    feats = jax.block_until_ready(feats)
    assert feats.shape == (2, 2048), feats.shape
    assert bool(jnp.all(jnp.isfinite(feats)))
    print("KERNEL_OK")
</pallas_src>

<mosaic_0001>
module attributes {stable_mosaic.version = 11 : i64} {
  func.func @_mm_fused_kernel(%arg0: i32, %arg1: i32, %arg2: memref<256x128xbf16, #tpu.memory_space<vmem>>, %arg3: memref<128x128xbf16, #tpu.memory_space<vmem>>, %arg4: memref<1x128xf32, #tpu.memory_space<vmem>>, %arg5: memref<256x128xbf16, #tpu.memory_space<vmem>>) attributes {dimension_semantics = [#tpu.dimension_semantics<parallel>, #tpu.dimension_semantics<parallel>], iteration_bounds = array<i64: 2, 1>, scalar_prefetch = 0 : i64, scratch_operands = 0 : i64, tpu.core_type = #tpu.core_type<tc>, window_params = [{transform_indices = @transform_0, window_bounds = array<i64: 256, 128>}, {transform_indices = @transform_1, window_bounds = array<i64: 128, 128>}, {transform_indices = @transform_2, window_bounds = array<i64: 1, 128>}, {transform_indices = @transform_3, window_bounds = array<i64: 256, 128>}]} {
    %c0 = arith.constant 0 : index
    %c0_0 = arith.constant 0 : index
    %0 = vector.load %arg2[%c0, %c0_0] : memref<256x128xbf16, #tpu.memory_space<vmem>>, vector<256x128xbf16>
    %c0_1 = arith.constant 0 : index
    %c0_2 = arith.constant 0 : index
    %1 = vector.load %arg3[%c0_1, %c0_2] : memref<128x128xbf16, #tpu.memory_space<vmem>>, vector<128x128xbf16>
    %cst = arith.constant dense<0.000000e+00> : vector<256x128xf32>
    %2 = tpu.matmul %0, %1, %cst {dimension_numbers = #tpu.dot_dimension_numbers<[1], [0], [0], [1], [0, 0, 1, 1], [], []>} : vector<256x128xbf16>, vector<128x128xbf16>, vector<256x128xf32> -> vector<256x128xf32>
    %c0_3 = arith.constant 0 : index
    %c0_4 = arith.constant 0 : index
    %3 = vector.load %arg4[%c0_3, %c0_4] : memref<1x128xf32, #tpu.memory_space<vmem>>, vector<1x128xf32>
    %4 = vector.broadcast %3 : vector<1x128xf32> to vector<256x128xf32>
    %5 = arith.addf %2, %4 : vector<256x128xf32>
    %cst_5 = arith.constant 0.000000e+00 : f32
    %6 = vector.broadcast %cst_5 : f32 to vector<256x128xf32>
    %7 = arith.maximumf %5, %6 : vector<256x128xf32>
    %8 = arith.truncf %7 : vector<256x128xf32> to vector<256x128xbf16>
    %c0_6 = arith.constant 0 : index
    %c0_7 = arith.constant 0 : index
    %9 = vector.load %arg5[%c0_6, %c0_7] : memref<256x128xbf16, #tpu.memory_space<vmem>>, vector<256x128xbf16>
    tpu.vector_store %arg5[%c0_6, %c0_7], %8 {strides = array<i32>} : memref<256x128xbf16, #tpu.memory_space<vmem>>, vector<256x128xbf16>,
    return
  }
  func.func @transform_0(%arg0: i32, %arg1: i32) -> (i32, i32) {
    %c0_i32 = arith.constant 0 : i32
    %c0_i32_0 = arith.constant 0 : i32
    return %arg0, %c0_i32 : i32, i32
  }
  func.func @transform_1(%arg0: i32, %arg1: i32) -> (i32, i32) {
    %c0_i32 = arith.constant 0 : i32
    %c0_i32_0 = arith.constant 0 : i32
    return %c0_i32, %arg1 : i32, i32
  }
  func.func @transform_2(%arg0: i32, %arg1: i32) -> (i32, i32) {
    %c0_i32 = arith.constant 0 : i32
    %c0_i32_0 = arith.constant 0 : i32
    return %c0_i32, %arg1 : i32, i32
  }
  func.func @transform_3(%arg0: i32, %arg1: i32) -> (i32, i32) {
    %c0_i32 = arith.constant 0 : i32
    return %arg0, %arg1 : i32, i32
  }
}

</mosaic_0001>

<llo_original>
// kernel: matmul_bias_act.1
$region0: #{matmul_bias_act.1}
  #allocation0 [shape = 'u32[]', space=smem, size = 0x4, offset = 0x4, fixed_abs, tag = 'smem constant byte address 0x4 - core index']
  #allocation1 [shape = 'u32[144,128]{1,0:T(1,128)}', space=vmem, size = 0x12000, scoped, tag = 'internal scratch']
  %s0 = inlined_call_operand.vmem [shape: bf16[512,128], index: 0, kind: input, shape index: {}]
  %s1 = inlined_call_operand.vmem [shape: bf16[128,128], index: 1, kind: input, shape index: {}]
  %s2 = inlined_call_operand.vmem [shape: f32[1,128], index: 2, kind: input, shape index: {}]
  %s3 = inlined_call_operand.vmem [shape: bf16[512,128], index: 3, kind: output, shape index: {}]
  %s4 = sld [smem:[#allocation0]]
  $region45: #{matmul_bias_act.1} parent=0
    _
  %s6 = ssub.s32 1, %s4
  %s7 = scalar_select 0, %s6, %s4
  loop: start=0, step=1, limit=4
  $region2: #{matmul_bias_act.1} parent=0 // loop_pre_header
    _
  $region3: #{matmul_bias_act.1} parent=0 // loop_header
    %s9 = sphi 0, %s13
    %p10 = scmp.ge.s32.totalorder %s9, 4
    %s16 = sphi 0, %s28
    %s17 = sphi 0, %s24
    %s18 = sphi 0, %s16
    %s19 = sphi 0, %s17
    %s20 = sphi 0, %s18
    %s21 = sphi 0, %s19
    %s31 = sphi 0, %s33
    %s34 = sphi 0, %s31
    %s35 = sphi 0, %s34
    %s51 = sphi 0, %s35
    %s57 = sphi 0, %s59
    %s60 = sphi 0, %s57
    %s61 = sphi 0, %s60
    %s77 = sphi 0, %s61
    %s83 = sphi 0, %s85
    %s86 = sphi 0, %s83
    %s87 = sphi 0, %s86
    %s103 = sphi 0, %s87
    %s111 = sphi 0, %s113
    %s114 = sphi 0, %s111
    %s115 = sphi 0, %s114
    %s131 = sphi 0, %s115
  $region4: #{matmul_bias_act.1} parent=0 // loop_header_branch
    %12 = sbr.rel (%p10) target = $region8
  $region5: #{matmul_bias_act.1} parent=0 // loop_body
    %s14 = ssub.s32 %s9, 1
    %s15 = ssub.s32 %s9, 2
    %s22 = sadd.s32 1, %s17
    %p23 = scmp.ge.s32.totalorder %s22, 1
    %s24 = scalar_select %p23, 0, %s22
    %s25 = sadd.s32 1, %s16
    %s26 = scalar_select %p23, %s25, %s16
    %p27 = scmp.ge.s32.totalorder %s26, 2
    %s28 = scalar_select %p27, 0, %s26
    %s29 = ssub.s32 %s16, %s28
    %p30 = scmp.eq.s32.totalorder %s29, 0
    %s32 = sadd.s32 %s31, 1
    %s33 = scalar_select %p30, %s31, %s32
    %p36 = pneg %p30
    %p37 = scmp.eq.s32.totalorder %s9, 1
    %p38 = por %p36, %p37
    %p39 = scmp.ne.s32.totalorder %s31, %s34
    %p40 = scmp.eq.s32.totalorder %s9, 0
    %p41 = por %p39, %p40
    %p42 = scmp.ne.s32.totalorder %s31, %s34
    %p43 = scmp.eq.s32.totalorder %s14, 1
    %p44 = por %p42, %p43
    %p45 = scmp.ne.s32.totalorder %s34, %s35
    %p46 = scmp.eq.s32.totalorder %s14, 0
    %p47 = por %p45, %p46
    %p48 = scmp.ne.s32.totalorder %s34, %s35
    %p49 = scmp.eq.s32.totalorder %s15, 1
    %p50 = por %p48, %p49
    %p52 = scmp.ne.s32.totalorder %s35, %s51
    %p53 = scmp.eq.s32.totalorder %s15, 0
    %p54 = por %p52, %p53
    %s55 = ssub.s32 %s17, %s24
    %p56 = scmp.eq.s32.totalorder %s55, 0
    %s58 = sadd.s32 %s57, 1
    %s59 = scalar_select %p56, %s57, %s58
    %p62 = pneg %p56
    %p63 = scmp.eq.s32.totalorder %s9, 1
    %p64 = por %p62, %p63
    %p65 = scmp.ne.s32.totalorder %s57, %s60
    %p66 = scmp.eq.s32.totalorder %s9, 0
    %p67 = por %p65, %p66
    %p68 = scmp.ne.s32.totalorder %s57, %s60
    %p69 = scmp.eq.s32.totalorder %s14, 1
    %p70 = por %p68, %p69
    %p71 = scmp.ne.s32.totalorder %s60, %s61
    %p72 = scmp.eq.s32.totalorder %s14, 0
    %p73 = por %p71, %p72
    %p74 = scmp.ne.s32.totalorder %s60, %s61
    %p75 = scmp.eq.s32.totalorder %s15, 1
    %p76 = por %p74, %p75
    %p78 = scmp.ne.s32.totalorder %s61, %s77
    %p79 = scmp.eq.s32.totalorder %s15, 0
    %p80 = por %p78, %p79
    %s81 = ssub.s32 %s17, %s24
    %p82 = scmp.eq.s32.totalorder %s81, 0
    %s84 = sadd.s32 %s83, 1
    %s85 = scalar_select %p82, %s83, %s84
    %p88 = pneg %p82
    %p89 = scmp.eq.s32.totalorder %s9, 1
    %p90 = por %p88, %p89
    %p91 = scmp.ne.s32.totalorder %s83, %s86
    %p92 = scmp.eq.s32.totalorder %s9, 0
    %p93 = por %p91, %p92
    %p94 = scmp.ne.s32.totalorder %s83, %s86
    %p95 = scmp.eq.s32.totalorder %s14, 1
    %p96 = por %p94, %p95
    %p97 = scmp.ne.s32.totalorder %s86, %s87
    %p98 = scmp.eq.s32.totalorder %s14, 0
    %p99 = por %p97, %p98
    %p100 = scmp.ne.s32.totalorder %s86, %s87
    %p101 = scmp.eq.s32.totalorder %s15, 1
    %p102 = por %p100, %p101
    %p104 = scmp.ne.s32.totalorder %s87, %s103
    %p105 = scmp.eq.s32.totalorder %s15, 0
    %p106 = por %p104, %p105
    %s107 = ssub.s32 %s16, %s28
    %s108 = ssub.s32 %s17, %s24
    %s109 = sor.u32 %s107, %s108
    %p110 = scmp.eq.s32.totalorder %s109, 0
    %s112 = sadd.s32 %s111, 1
    %s113 = scalar_select %p110, %s111, %s112
    %p116 = pneg %p110
    %p117 = scmp.eq.s32.totalorder %s9, 1
    %p118 = por %p116, %p117
    %p119 = scmp.ne.s32.totalorder %s111, %s114
    %p120 = scmp.eq.s32.totalorder %s9, 0
    %p121 = por %p119, %p120
    %p122 = scmp.ne.s32.totalorder %s111, %s114
    %p123 = scmp.eq.s32.totalorder %s14, 1
    %p124 = por %p122, %p123
    %p125 = scmp.ne.s32.totalorder %s114, %s115
    %p126 = scmp.eq.s32.totalorder %s14, 0
    %p127 = por %p125, %p126
    %p128 = scmp.ne.s32.totalorder %s114, %s115
    %p129 = scmp.eq.s32.totalorder %s15, 1
    %p130 = por %p128, %p129
    %p132 = scmp.ne.s32.totalorder %s115, %s131
    %p133 = scmp.eq.s32.totalorder %s15, 0
    %p134 = por %p132, %p133
    %p135 = scmp.le.s32.totalorder 1, %s9
    %p136 = scmp.lt.s32.totalorder %s9, 3
    %p137 = pnand %p135, %p136
    %p138 = pneg %p137
    // Predicated region
    $region9: #{matmul_bias_act.1} parent=5 // pred_check
      _
    $region10: #{matmul_bias_act.1} parent=5 // pred_check_branch
      %140 = sbr.rel (%p137) target = $region12
    $region11: #{matmul_bias_act.1} parent=5 // pred_region
      %s141 = ssub.s32 %s9, 1
      // Predicated region
      $region13: #{matmul_bias_act.1} parent=11 // pred_check
        %p142 = pneg %p73
      $region14: #{matmul_bias_act.1} parent=11 // pred_check_branch
        %144 = sbr.rel (%p142) target = $region16
      $region15: #{matmul_bias_act.1} parent=11 // pred_region
        %p145 = scmp.lt.s32.totalorder %s19, 0
        %s146 = scalar_select %p145, %s19, 0
        %s147 = smul.addr %s146, 4
        %s148 = scalar_lea.vmem %s1, %s147
      $region16: #{matmul_bias_act.1} parent=11 // pred_fallthru
        _
      // Predicated region
      $region17: #{matmul_bias_act.1} parent=11 // pred_check
        %p149 = pneg %p99
      $region18: #{matmul_bias_act.1} parent=11 // pred_check_branch
        %151 = sbr.rel (%p149) target = $region20
      $region19: #{matmul_bias_act.1} parent=11 // pred_region
        %p152 = scmp.lt.s32.totalorder %s19, 0
        %s153 = scalar_select %p152, %s19, 0
        %s154 = scalar_lea.vmem %s2, %s153
      $region20: #{matmul_bias_act.1} parent=11 // pred_fallthru
        _
    $region12: #{matmul_bias_act.1} parent=5 // pred_fallthru
      _
    %p155 = scmp.lt.s32.totalorder %s9, 2
    // Predicated region
    $region21: #{matmul_bias_act.1} parent=5 // pred_check
      %p156 = pneg %p155
    $region22: #{matmul_bias_act.1} parent=5 // pred_check_branch
      %158 = sbr.rel (%p156) target = $region24
    $region23: #{matmul_bias_act.1} parent=5 // pred_region
      // Predicated region
      $region25: #{matmul_bias_act.1} parent=23 // pred_check
        %p159 = pneg %p41
      $region26: #{matmul_bias_act.1} parent=23 // pred_check_branch
        %161 = sbr.rel (%p159) target = $region28
      $region27: #{matmul_bias_act.1} parent=23 // pred_region
        %s162 = smul.u32 32, %s16
        %p163 = scmp.lt.s32.totalorder %s162, 63
        %s164 = scalar_select %p163, %s162, 63
        %s165 = smul.addr %s164, 4
        %s166 = scalar_lea.vmem %s0, %s165
        %s167 = smul.u32 32, %s16
      $region28: #{matmul_bias_act.1} parent=23 // pred_fallthru
        _
    $region24: #{matmul_bias_act.1} parent=5 // pred_fallthru
      _
    %p168 = scmp.le.s32.totalorder 1, %s9
    %p169 = scmp.lt.s32.totalorder %s9, 3
    %p170 = pnand %p168, %p169
    %p171 = pneg %p170
    // Predicated region
    $region29: #{matmul_bias_act.1} parent=5 // pred_check
      _
    $region30: #{matmul_bias_act.1} parent=5 // pred_check_branch
      %173 = sbr.rel (%p170) target = $region32
    $region31: #{matmul_bias_act.1} parent=5 // pred_region
      %s174 = ssub.s32 %s9, 1
      %s175 = smul.u32 32, %s18
      %p176 = scmp.lt.s32.totalorder %s175, 63
      %s177 = scalar_select %p176, %s175, 63
      %s178 = smul.addr %s177, 4
      %s179 = scalar_lea.vmem %s0, %s178
      %p180 = pneg %p47
      %p181 = pneg %p44
      %p182 = scmp.lt.s32.totalorder %s19, 0
      %s183 = scalar_select %p182, %s19, 0
      %s184 = smul.addr %s183, 4
      %s185 = scalar_lea.vmem %s1, %s184
      %p186 = pneg %p73
      %p187 = pneg %p70
      %p188 = scmp.lt.s32.totalorder %s19, 0
      %s189 = scalar_select %p188, %s19, 0
      %s190 = scalar_lea.vmem %s2, %s189
      %p191 = pneg %p99
      %p192 = pneg %p96
      %p193 = pneg %p127
      %p194 = pneg %p124
      %s195 = smul.u32 32, %s18
      %p196 = scmp.lt.s32.totalorder %s195, 63
      %s197 = scalar_select %p196, %s195, 63
      %p198 = scmp.lt.s32.totalorder %s19, 0
      %s199 = scalar_select %p198, %s19, 0
      %s200 = sadd.s32 %s199, %s197
      %s201 = smul.addr %s200, 4
      %s202 = scalar_lea.vmem %s3, %s201
      %s203 = smul.u32 32, %s18
      %p204 = scmp.lt.s32.totalorder %s203, 63
      %s205 = scalar_select %p204, %s203, 63
      %s206 = smul.addr %s205, 4
      %s207 = scalar_lea.vmem %s0, %s206
      %s208 = smul.u32 32, %s18
      %p209 = scmp.lt.s32.totalorder %s19, 0
      %s210 = scalar_select %p209, %s19, 0
      %s211 = smul.addr %s210, 4
      %s212 = scalar_lea.vmem %s1, %s211
      %p213 = scmp.lt.s32.totalorder %s19, 0
      %s214 = scalar_select %p213, %s19, 0
      %s215 = scalar_lea.vmem %s2, %s214
      %s216 = smul.u32 32, %s18
      %p217 = scmp.lt.s32.totalorder %s216, 63
      %s218 = scalar_select %p217, %s216, 63
      %p219 = scmp.lt.s32.totalorder %s19, 0
      %s220 = scalar_select %p219, %s19, 0
      %s221 = sadd.s32 %s220, %s218
      %s222 = smul.addr %s221, 4
      %s223 = scalar_lea.vmem %s3, %s222
      %s224 = smul.u32 32, %s18
      %v226 = vld [vmem:[%s207] sm:$0xf]
      %v227 = vld [vmem:[%s207 + $0x4] sm:$0xf]
      %v228 = vld [vmem:[%s207 + $0x8] sm:$0xf]
      %v229 = vld [vmem:[%s207 + $0xc] sm:$0xf]
      %v230 = vld [vmem:[%s207 + $0x10] sm:$0xf]
      %v231 = vld [vmem:[%s207 + $0x14] sm:$0xf]
      %v232 = vld [vmem:[%s207 + $0x18] sm:$0xf]
      %v233 = vld [vmem:[%s207 + $0x1c] sm:$0xf]
      %v234 = vld [vmem:[%s207 + $0x20] sm:$0xf]
      %v235 = vld [vmem:[%s207 + $0x24] sm:$0xf]
      %v236 = vld [vmem:[%s207 + $0x28] sm:$0xf]
      %v237 = vld [vmem:[%s207 + $0x2c] sm:$0xf]
      %v238 = vld [vmem:[%s207 + $0x30] sm:$0xf]
      %v239 = vld [vmem:[%s207 + $0x34] sm:$0xf]
      %v240 = vld [vmem:[%s207 + $0x38] sm:$0xf]
      %v241 = vld [vmem:[%s207 + $0x3c] sm:$0xf]
      %v242 = vld [vmem:[%s207 + $0x40] sm:$0xf]
      %v243 = vld [vmem:[%s207 + $0x44] sm:$0xf]
      %v244 = vld [vmem:[%s207 + $0x48] sm:$0xf]
      %v245 = vld [vmem:[%s207 + $0x4c] sm:$0xf]
      %v246 = vld [vmem:[%s207 + $0x50] sm:$0xf]
      %v247 = vld [vmem:[%s207 + $0x54] sm:$0xf]
      %v248 = vld [vmem:[%s207 + $0x58] sm:$0xf]
      %v249 = vld [vmem:[%s207 + $0x5c] sm:$0xf]
      %v250 = vld [vmem:[%s207 + $0x60] sm:$0xf]
      %v251 = vld [vmem:[%s207 + $0x64] sm:$0xf]
      %v252 = vld [vmem:[%s207 + $0x68] sm:$0xf]
      %v253 = vld [vmem:[%s207 + $0x6c] sm:$0xf]
      %v254 = vld [vmem:[%s207 + $0x70] sm:$0xf]
      %v255 = vld [vmem:[%s207 + $0x74] sm:$0xf]
      %v256 = vld [vmem:[%s207 + $0x78] sm:$0xf]
      %v257 = vld [vmem:[%s207 + $0x7c] sm:$0xf]
      %v258 = vld [vmem:[%s212] sm:$0xf]
      %v259 = vld [vmem:[%s212 + $0x4] sm:$0xf]
      %v260 = vld [vmem:[%s212 + $0x8] sm:$0xf]
      %v261 = vld [vmem:[%s212 + $0xc] sm:$0xf]
      %v262 = vld [vmem:[%s212 + $0x10] sm:$0xf]
      %v263 = vld [vmem:[%s212 + $0x14] sm:$0xf]
      %v264 = vld [vmem:[%s212 + $0x18] sm:$0xf]
      %v265 = vld [vmem:[%s212 + $0x1c] sm:$0xf]
      %v266 = vld [vmem:[%s212 + $0x20] sm:$0xf]
      %v267 = vld [vmem:[%s212 + $0x24] sm:$0xf]
      %v268 = vld [vmem:[%s212 + $0x28] sm:$0xf]
      %v269 = vld [vmem:[%s212 + $0x2c] sm:$0xf]
      %v270 = vld [vmem:[%s212 + $0x30] sm:$0xf]
      %v271 = vld [vmem:[%s212 + $0x34] sm:$0xf]
      %v272 = vld [vmem:[%s212 + $0x38] sm:$0xf]
      %v273 = vld [vmem:[%s212 + $0x3c] sm:$0xf]
      %v274 = vld [vmem:[%s215] sm:$0x1]
      %v276 = vlaneseq
      %v277 = vshrl.u32 %v276, 7
      %v278 = vsub.s32 0, %v277
      %v279 = vrot.slane %v274, %v278
      %v313 = vunpack.c.l.b16 %v226
      %v314 = vunpack.c.l.b16 %v227
      %v315 = vunpack.c.l.b16 %v228
      %v316 = vunpack.c.l.b16 %v229
      %v317 = vunpack.c.l.b16 %v230
      %v318 = vunpack.c.l.b16 %v231
      %v319 = vunpack.c.l.b16 %v232
      %v320 = vunpack.c.l.b16 %v233
      %v321 = vunpack.c.l.b16 %v234
      %v322 = vunpack.c.l.b16 %v235
      %v323 = vunpack.c.l.b16 %v236
      %v324 = vunpack.c.l.b16 %v237
      %v325 = vunpack.c.l.b16 %v238
      %v326 = vunpack.c.l.b16 %v239
      %v327 = vunpack.c.l.b16 %v240
      %v328 = vunpack.c.l.b16 %v241
      %v329 = vunpack.c.l.b16 %v242
      %v330 = vunpack.c.l.b16 %v243
      %v331 = vunpack.c.l.b16 %v244
      %v332 = vunpack.c.l.b16 %v245
      %v333 = vunpack.c.l.b16 %v246
      %v334 = vunpack.c.l.b16 %v247
      %v335 = vunpack.c.l.b16 %v248
      %v336 = vunpack.c.l.b16 %v249
      %v337 = vunpack.c.l.b16 %v250
      %v338 = vunpack.c.l.b16 %v251
      %v339 = vunpack.c.l.b16 %v252
      %v340 = vunpack.c.l.b16 %v253
      %v341 = vunpack.c.l.b16 %v254
      %v342 = vunpack.c.l.b16 %v255
      %v343 = vunpack.c.l.b16 %v256
      %v344 = vunpack.c.l.b16 %v257
      %v345 = vpack.c.b16 %v314, %v313
      %v346 = vpack.c.b16 %v316, %v315
      %v347 = vpack.c.b16 %v318, %v317
      %v348 = vpack.c.b16 %v320, %v319
      %v349 = vpack.c.b16 %v322, %v321
      %v350 = vpack.c.b16 %v324, %v323
      %v351 = vpack.c.b16 %v326, %v325
      %v352 = vpack.c.b16 %v328, %v327
      %v353 = vpack.c.b16 %v330, %v329
      %v354 = vpack.c.b16 %v332, %v331
      %v355 = vpack.c.b16 %v334, %v333
      %v356 = vpack.c.b16 %v336, %v335
      %v357 = vpack.c.b16 %v338, %v337
      %v358 = vpack.c.b16 %v340, %v339
      %v359 = vpack.c.b16 %v342, %v341
      %v360 = vpack.c.b16 %v344, %v343
      %v393 = vunpack.c.l.b16 %v258
      %v394 = vunpack.c.l.b16 %v259
      %v395 = vunpack.c.l.b16 %v260
      %v396 = vunpack.c.l.b16 %v261
      %v397 = vunpack.c.l.b16 %v262
      %v398 = vunpack.c.l.b16 %v263
      %v399 = vunpack.c.l.b16 %v264
      %v400 = vunpack.c.l.b16 %v265
      %v401 = vunpack.c.l.b16 %v266
      %v402 = vunpack.c.l.b16 %v267
      %v403 = vunpack.c.l.b16 %v268
      %v404 = vunpack.c.l.b16 %v269
      %v405 = vunpack.c.l.b16 %v270
      %v406 = vunpack.c.l.b16 %v271
      %v407 = vunpack.c.l.b16 %v272
      %v408 = vunpack.c.l.b16 %v273
      %v409 = vpack.c.b16 %v394, %v393
      %v410 = vpack.c.b16 %v396, %v395
      %v411 = vpack.c.b16 %v398, %v397
      %v412 = vpack.c.b16 %v400, %v399
      %v413 = vpack.c.b16 %v402, %v401
      %v414 = vpack.c.b16 %v404, %v403
      %v415 = vpack.c.b16 %v406, %v405
      %v416 = vpack.c.b16 %v408, %v407
      %425 = vmatprep.subr.bf16.mxu0 0
      %426 = vmatpush1.bf16.msra.mxu0 %v409
      %427 = vmatprep.subr.bf16.mxu0 0
      %428 = vmatpush1.bf16.msra.mxu0 %v410
      %429 = vmatprep.subr.bf16.mxu0 0
      %430 = vmatpush1.bf16.msra.mxu0 %v411
      %431 = vmatprep.subr.bf16.mxu0 0
      %432 = vmatpush1.bf16.msra.mxu0 %v412
      %433 = vmatprep.subr.bf16.mxu0 0
      %434 = vmatpush1.bf16.msra.mxu0 %v413
      %435 = vmatprep.subr.bf16.mxu0 0
      %436 = vmatpush1.bf16.msra.mxu0 %v414
      %437 = vmatprep.subr.bf16.mxu0 0
      %438 = vmatpush1.bf16.msra.mxu0 %v415
      %439 = vmatprep.subr.bf16.mxu0 0
      %440 = vmatpush1.bf16.msra.mxu0 %v416
      %441 = vmatprep.subr.bf16.mxu0 0
      %442 = vmatpush1.bf16.msra.mxu0 0
      %443 = vmatprep.subr.bf16.mxu0 0
      %444 = vmatpush1.bf16.msra.mxu0 0
      %445 = vmatprep.subr.bf16.mxu0 0
      %446 = vmatpush1.bf16.msra.mxu0 0
      %447 = vmatprep.subr.bf16.mxu0 0
      %448 = vmatpush1.bf16.msra.mxu0 0
      %449 = vmatprep.subr.bf16.mxu0 0
      %450 = vmatpush1.bf16.msra.mxu0 0
      %451 = vmatprep.subr.bf16.mxu0 0
      %452 = vmatpush1.bf16.msra.mxu0 0
      %453 = vmatprep.subr.bf16.mxu0 0
      %454 = vmatpush1.bf16.msra.mxu0 0
      %455 = vmatprep.subr.bf16.mxu0 0
      %456 = vmatpush1.bf16.msra.mxu0 0
      %457 = vmatprep.mubr.bf16.mxu0 0
      %458 = vmatmul.mubr.bf16.gmra.mrb[0].mxu0 %v345
      %v459 = vpop.f32.mrb[0].mxu0
      %v460 = vadd.f32 %v279, %v459
      %v461 = vpop.f32.mrb[0].mxu0
      %v462 = vpop.f32.mrb[0].mxu0
      %v463 = vadd.f32 %v279, %v462
      %v464 = vpop.f32.mrb[0].mxu0
      %465 = vmatprep.mubr.bf16.mxu0 0
      %466 = vmatmul.mubr.bf16.gmra.mrb[0].mxu0 %v346
      %v467 = vpop.f32.mrb[0].mxu0
      %v468 = vadd.f32 %v279, %v467
      %v469 = vpop.f32.mrb[0].mxu0
      %v470 = vpop.f32.mrb[0].mxu0
      %v471 = vadd.f32 %v279, %v470
      %v472 = vpop.f32.mrb[0].mxu0
      %473 = vmatprep.mubr.bf16.mxu0 0
      %474 = vmatmul.mubr.bf16.gmra.mrb[0].mxu0 %v347
      %v475 = vpop.f32.mrb[0].mxu0
      %v476 = vadd.f32 %v279, %v475
      %v477 = vpop.f32.mrb[0].mxu0
      %v478 = vpop.f32.mrb[0].mxu0
      %v479 = vadd.f32 %v279, %v478
      %v480 = vpop.f32.mrb[0].mxu0
      %481 = vmatprep.mubr.bf16.mxu0 0
      %482 = vmatmul.mubr.bf16.gmra.mrb[0].mxu0 %v348
      %v483 = vpop.f32.mrb[0].mxu0
      %v484 = vadd.f32 %v279, %v483
      %v485 = vpop.f32.mrb[0].mxu0
      %v486 = vpop.f32.mrb[0].mxu0
      %v487 = vadd.f32 %v279, %v486
      %v488 = vpop.f32.mrb[0].mxu0
      %489 = vmatprep.mubr.bf16.mxu0 0
      %490 = vmatmul.mubr.bf16.gmra.mrb[0].mxu0 %v349
      %v491 = vpop.f32.mrb[0].mxu0
      %v492 = vadd.f32 %v279, %v491
      %v493 = vpop.f32.mrb[0].mxu0
      %v494 = vpop.f32.mrb[0].mxu0
      %v495 = vadd.f32 %v279, %v494
      %v496 = vpop.f32.mrb[0].mxu0
      %497 = vmatprep.mubr.bf16.mxu0 0
      %498 = vmatmul.mubr.bf16.gmra.mrb[0].mxu0 %v350
      %v499 = vpop.f32.mrb[0].mxu0
      %v500 = vadd.f32 %v279, %v499
      %v501 = vpop.f32.mrb[0].mxu0
      %v502 = vpop.f32.mrb[0].mxu0
      %v503 = vadd.f32 %v279, %v502
      %v504 = vpop.f32.mrb[0].mxu0
      %505 = vmatprep.mubr.bf16.mxu0 0
      %506 = vmatmul.mubr.bf16.gmra.mrb[0].mxu0 %v351
      %v507 = vpop.f32.mrb[0].mxu0
      %v508 = vadd.f32 %v279, %v507
      %v509 = vpop.f32.mrb[0].mxu0
      %v510 = vpop.f32.mrb[0].mxu0
      %v511 = vadd.f32 %v279, %v510
      %v512 = vpop.f32.mrb[0].mxu0
      %513 = vmatprep.mubr.bf16.mxu0 0
      %514 = vmatmul.mubr.bf16.gmra.mrb[0].mxu0 %v352
      %v515 = vpop.f32.mrb[0].mxu0
      %v516 = vadd.f32 %v279, %v515
      %v517 = vpop.f32.mrb[0].mxu0
      %v518 = vpop.f32.mrb[0].mxu0
      %v519 = vadd.f32 %v279, %v518
      %v520 = vpop.f32.mrb[0].mxu0
      %521 = vmatprep.mubr.bf16.mxu0 0
      %522 = vmatmul.mubr.bf16.gmra.mrb[0].mxu0 %v353
      %v523 = vpop.f32.mrb[0].mxu0
      %v524 = vadd.f32 %v279, %v523
      %v525 = vpop.f32.mrb[0].mxu0
      %v526 = vpop.f32.mrb[0].mxu0
      %v527 = vadd.f32 %v279, %v526
      %v528 = vpop.f32.mrb[0].mxu0
      %529 = vmatprep.mubr.bf16.mxu0 0
      %530 = vmatmul.mubr.bf16.gmra.mrb[0].mxu0 %v354
      %v531 = vpop.f32.mrb[0].mxu0
      %v532 = vadd.f32 %v279, %v531
      %v533 = vpop.f32.mrb[0].mxu0
      %v534 = vpop.f32.mrb[0].mxu0
      %v535 = vadd.f32 %v279, %v534
      %v536 = vpop.f32.mrb[0].mxu0
      %537 = vmatprep.mubr.bf16.mxu0 0
      %538 = vmatmul.mubr.bf16.gmra.mrb[0].mxu0 %v355
      %v539 = vpop.f32.mrb[0].mxu0
      %v540 = vadd.f32 %v279, %v539
      %v541 = vpop.f32.mrb[0].mxu0
      %v542 = vpop.f32.mrb[0].mxu0
      %v543 = vadd.f32 %v279, %v542
      %v544 = vpop.f32.mrb[0].mxu0
      %545 = vmatprep.mubr.bf16.mxu0 0
      %546 = vmatmul.mubr.bf16.gmra.mrb[0].mxu0 %v356
      %v547 = vpop.f32.mrb[0].mxu0
      %v548 = vadd.f32 %v279, %v547
      %v549 = vpop.f32.mrb[0].mxu0
      %v550 = vpop.f32.mrb[0].mxu0
      %v551 = vadd.f32 %v279, %v550
      %v552 = vpop.f32.mrb[0].mxu0
      %553 = vmatprep.mubr.bf16.mxu0 0
      %554 = vmatmul.mubr.bf16.gmra.mrb[0].mxu0 %v357
      %v555 = vpop.f32.mrb[0].mxu0
      %v556 = vadd.f32 %v279, %v555
      %v557 = vpop.f32.mrb[0].mxu0
      %v558 = vpop.f32.mrb[0].mxu0
      %v559 = vadd.f32 %v279, %v558
      %v560 = vpop.f32.mrb[0].mxu0
      %561 = vmatprep.mubr.bf16.mxu0 0
      %562 = vmatmul.mubr.bf16.gmra.mrb[0].mxu0 %v358
      %v563 = vpop.f32.mrb[0].mxu0
      %v564 = vadd.f32 %v279, %v563
      %v565 = vpop.f32.mrb[0].mxu0
      %v566 = vpop.f32.mrb[0].mxu0
      %v567 = vadd.f32 %v279, %v566
      %v568 = vpop.f32.mrb[0].mxu0
      %569 = vmatprep.mubr.bf16.mxu0 0
      %570 = vmatmul.mubr.bf16.gmra.mrb[0].mxu0 %v359
      %v571 = vpop.f32.mrb[0].mxu0
      %v572 = vadd.f32 %v279, %v571
      %v573 = vpop.f32.mrb[0].mxu0
      %v574 = vpop.f32.mrb[0].mxu0
      %v575 = vadd.f32 %v279, %v574
      %v576 = vpop.f32.mrb[0].mxu0
      %577 = vmatprep.mubr.bf16.mxu0 0
      %578 = vmatmul.mubr.bf16.gmra.mrb[0].mxu0 %v360
      %v579 = vpop.f32.mrb[0].mxu0
      %v580 = vadd.f32 %v279, %v579
      %v581 = vpop.f32.mrb[0].mxu0
      %v582 = vpop.f32.mrb[0].mxu0
      %v583 = vadd.f32 %v279, %v582
      %v584 = vpop.f32.mrb[0].mxu0
      %585 = vdwg.mxu0
      %v586 = vmax.f32 %v460, 0.0
      %v587 = vmax.f32 %v463, 0.0
      %v588 = vmax.f32 %v468, 0.0
      %v589 = vmax.f32 %v471, 0.0
      %v590 = vmax.f32 %v476, 0.0
      %v591 = vmax.f32 %v479, 0.0
      %v592 = vmax.f32 %v484, 0.0
      %v593 = vmax.f32 %v487, 0.0
      %v594 = vmax.f32 %v492, 0.0
      %v595 = vmax.f32 %v495, 0.0
      %v596 = vmax.f32 %v500, 0.0
      %v597 = vmax.f32 %v503, 0.0
      %v598 = vmax.f32 %v508, 0.0
      %v599 = vmax.f32 %v511, 0.0
      %v600 = vmax.f32 %v516, 0.0
      %v601 = vmax.f32 %v519, 0.0
      %v602 = vmax.f32 %v524, 0.0
      %v603 = vmax.f32 %v527, 0.0
      %v604 = vmax.f32 %v532, 0.0
      %v605 = vmax.f32 %v535, 0.0
      %v606 = vmax.f32 %v540, 0.0
      %v607 = vmax.f32 %v543, 0.0
      %v608 = vmax.f32 %v548, 0.0
      %v609 = vmax.f32 %v551, 0.0
      %v610 = vmax.f32 %v556, 0.0
      %v611 = vmax.f32 %v559, 0.0
      %v612 = vmax.f32 %v564, 0.0
      %v613 = vmax.f32 %v567, 0.0
      %v614 = vmax.f32 %v572, 0.0
      %v615 = vmax.f32 %v575, 0.0
      %v616 = vmax.f32 %v580, 0.0
      %v617 = vmax.f32 %v583, 0.0
      %v618 = vpack.c.bf16 %v587, %v586
      %v619 = vpack.c.bf16 %v589, %v588
      %v620 = vpack.c.bf16 %v591, %v590
      %v621 = vpack.c.bf16 %v593, %v592
      %v622 = vpack.c.bf16 %v595, %v594
      %v623 = vpack.c.bf16 %v597, %v596
      %v624 = vpack.c.bf16 %v599, %v598
      %v625 = vpack.c.bf16 %v601, %v600
      %v626 = vpack.c.bf16 %v603, %v602
      %v627 = vpack.c.bf16 %v605, %v604
      %v628 = vpack.c.bf16 %v607, %v606
      %v629 = vpack.c.bf16 %v609, %v608
      %v630 = vpack.c.bf16 %v611, %v610
      %v631 = vpack.c.bf16 %v613, %v612
      %v632 = vpack.c.bf16 %v615, %v614
      %v633 = vpack.c.bf16 %v617, %v616
      %v650 = vunpack.c.l.b16 %v618
      %v651 = vunpack.c.h.b16 %v618
      %v652 = vunpack.c.l.b16 %v619
      %v653 = vunpack.c.h.b16 %v619
      %v654 = vunpack.c.l.b16 %v620
      %v655 = vunpack.c.h.b16 %v620
      %v656 = vunpack.c.l.b16 %v621
      %v657 = vunpack.c.h.b16 %v621
      %v658 = vunpack.c.l.b16 %v622
      %v659 = vunpack.c.h.b16 %v622
      %v660 = vunpack.c.l.b16 %v623
      %v661 = vunpack.c.h.b16 %v623
      %v662 = vunpack.c.l.b16 %v624
      %v663 = vunpack.c.h.b16 %v624
      %v664 = vunpack.c.l.b16 %v625
      %v665 = vunpack.c.h.b16 %v625
      %v666 = vunpack.c.l.b16 %v626
      %v667 = vunpack.c.h.b16 %v626
      %v668 = vunpack.c.l.b16 %v627
      %v669 = vunpack.c.h.b16 %v627
      %v670 = vunpack.c.l.b16 %v628
      %v671 = vunpack.c.h.b16 %v628
      %v672 = vunpack.c.l.b16 %v629
      %v673 = vunpack.c.h.b16 %v629
      %v674 = vunpack.c.l.b16 %v630
      %v675 = vunpack.c.h.b16 %v630
      %v676 = vunpack.c.l.b16 %v631
      %v677 = vunpack.c.h.b16 %v631
      %v678 = vunpack.c.l.b16 %v632
      %v679 = vunpack.c.h.b16 %v632
      %v680 = vunpack.c.l.b16 %v633
      %v681 = vunpack.c.h.b16 %v633
      %v682 = vpack.c.b16 %v650, %v650
      %v683 = vpack.c.b16 %v651, %v651
      %v684 = vpack.c.b16 %v652, %v652
      %v685 = vpack.c.b16 %v653, %v653
      %v686 = vpack.c.b16 %v654, %v654
      %v687 = vpack.c.b16 %v655, %v655
      %v688 = vpack.c.b16 %v656, %v656
      %v689 = vpack.c.b16 %v657, %v657
      %v690 = vpack.c.b16 %v658, %v658
      %v691 = vpack.c.b16 %v659, %v659
      %v692 = vpack.c.b16 %v660, %v660
      %v693 = vpack.c.b16 %v661, %v661
      %v694 = vpack.c.b16 %v662, %v662
      %v695 = vpack.c.b16 %v663, %v663
      %v696 = vpack.c.b16 %v664, %v664
      %v697 = vpack.c.b16 %v665, %v665
      %v698 = vpack.c.b16 %v666, %v666
      %v699 = vpack.c.b16 %v667, %v667
      %v700 = vpack.c.b16 %v668, %v668
      %v701 = vpack.c.b16 %v669, %v669
      %v702 = vpack.c.b16 %v670, %v670
      %v703 = vpack.c.b16 %v671, %v671
      %v704 = vpack.c.b16 %v672, %v672
      %v705 = vpack.c.b16 %v673, %v673
      %v706 = vpack.c.b16 %v674, %v674
      %v707 = vpack.c.b16 %v675, %v675
      %v708 = vpack.c.b16 %v676, %v676
      %v709 = vpack.c.b16 %v677, %v677
      %v710 = vpack.c.b16 %v678, %v678
      %v711 = vpack.c.b16 %v679, %v679
      %v712 = vpack.c.b16 %v680, %v680
      %v713 = vpack.c.b16 %v681, %v681
      %746 = vst [vmem:[%s223] sm:$0xf] %v682
      %747 = vst [vmem:[%s223 + $0x4] sm:$0xf] %v683
      %748 = vst [vmem:[%s223 + $0x8] sm:$0xf] %v684
      %749 = vst [vmem:[%s223 + $0xc] sm:$0xf] %v685
      %750 = vst [vmem:[%s223 + $0x10] sm:$0xf] %v686
      %751 = vst [vmem:[%s223 + $0x14] sm:$0xf] %v687
      %752 = vst [vmem:[%s223 + $0x18] sm:$0xf] %v688
      %753 = vst [vmem:[%s223 + $0x1c] sm:$0xf] %v689
      %754 = vst [vmem:[%s223 + $0x20] sm:$0xf] %v690
      %755 = vst [vmem:[%s223 + $0x24] sm:$0xf] %v691
      %756 = vst [vmem:[%s223 + $0x28] sm:$0xf] %v692
      %757 = vst [vmem:[%s223 + $0x2c] sm:$0xf] %v693
      %758 = vst [vmem:[%s223 + $0x30] sm:$0xf] %v694
      %759 = vst [vmem:[%s223 + $0x34] sm:$0xf] %v695
      %760 = vst [vmem:[%s223 + $0x38] sm:$0xf] %v696
      %761 = vst [vmem:[%s223 + $0x3c] sm:$0xf] %v697
      %762 = vst [vmem:[%s223 + $0x40] sm:$0xf] %v698
      %763 = vst [vmem:[%s223 + $0x44] sm:$0xf] %v699
      %764 = vst [vmem:[%s223 + $0x48] sm:$0xf] %v700
      %765 = vst [vmem:[%s223 + $0x4c] sm:$0xf] %v701
      %766 = vst [vmem:[%s223 + $0x50] sm:$0xf] %v702
      %767 = vst [vmem:[%s223 + $0x54] sm:$0xf] %v703
      %768 = vst [vmem:[%s223 + $0x58] sm:$0xf] %v704
      %769 = vst [vmem:[%s223 + $0x5c] sm:$0xf] %v705
      %770 = vst [vmem:[%s223 + $0x60] sm:$0xf] %v706
      %771 = vst [vmem:[%s223 + $0x64] sm:$0xf] %v707
      %772 = vst [vmem:[%s223 + $0x68] sm:$0xf] %v708
      %773 = vst [vmem:[%s223 + $0x6c] sm:$0xf] %v709
      %774 = vst [vmem:[%s223 + $0x70] sm:$0xf] %v710
      %775 = vst [vmem:[%s223 + $0x74] sm:$0xf] %v711
      %776 = vst [vmem:[%s223 + $0x78] sm:$0xf] %v712
      %777 = vst [vmem:[%s223 + $0x7c] sm:$0xf] %v713
      %s778 = smul.u32 32, %s18
      %p779 = scmp.lt.s32.totalorder %s778, 63
      %s780 = scalar_select %p779, %s778, 63
      %p781 = scmp.lt.s32.totalorder %s19, 0
      %s782 = scalar_select %p781, %s19, 0
      %s783 = sadd.s32 %s782, %s780
      %s784 = smul.addr %s783, 4
      %s785 = scalar_lea.vmem %s3, %s784
      // Predicated region
      $region33: #{matmul_bias_act.1} parent=31 // pred_check
        %p786 = pneg %p124
      $region34: #{matmul_bias_act.1} parent=31 // pred_check_branch
        %788 = sbr.rel (%p786) target = $region36
      $region35: #{matmul_bias_act.1} parent=31 // pred_region
        %s789 = smul.u32 32, %s18
      $region36: #{matmul_bias_act.1} parent=31 // pred_fallthru
        _
    $region32: #{matmul_bias_act.1} parent=5 // pred_fallthru
      _
    %p790 = scmp.le.s32.totalorder 2, %s9
    // Predicated region
    $region37: #{matmul_bias_act.1} parent=5 // pred_check
      %p791 = pneg %p790
    $region38: #{matmul_bias_act.1} parent=5 // pred_check_branch
      %793 = sbr.rel (%p791) target = $region40
    $region39: #{matmul_bias_act.1} parent=5 // pred_region
      %s794 = ssub.s32 %s9, 2
      // Predicated region
      $region41: #{matmul_bias_act.1} parent=39 // pred_check
        %p795 = pneg %p130
      $region42: #{matmul_bias_act.1} parent=39 // pred_check_branch
        %797 = sbr.rel (%p795) target = $region44
      $region43: #{matmul_bias_act.1} parent=39 // pred_region
        %s798 = smul.u32 32, %s20
        %p799 = scmp.lt.s32.totalorder %s798, 63
        %s800 = scalar_select %p799, %s798, 63
        %p801 = scmp.lt.s32.totalorder %s21, 0
        %s802 = scalar_select %p801, %s21, 0
        %s803 = sadd.s32 %s802, %s800
        %s804 = smul.addr %s803, 4
        %s805 = scalar_lea.vmem %s3, %s804
      $region44: #{matmul_bias_act.1} parent=39 // pred_fallthru
        _
    $region40: #{matmul_bias_act.1} parent=5 // pred_fallthru
      _
  $region6: #{matmul_bias_act.1} parent=0 // loop_footer
    %s13 = sadd.s32 1, %s9
  $region7: #{matmul_bias_act.1} parent=0 // loop_footer_branch
    %8 = sbr.rel target = $region3
  $region8: #{matmul_bias_act.1} parent=0 // loop_exit
    _

</llo_original>
